<compile_context>
chip_gen: v7x
topology: tpu7x:2x2x1
jax: 0.10.0
libtpu: 0.0.40
codegen_flags: <defaults>
</compile_context>

<pallas_src>
import functools

import jax
import jax.numpy as jnp
from jax import lax
from jax.experimental import pallas as pl
from jax.experimental.pallas import tpu as pltpu


_TILE_ELEMS = 256 * 1024   # ~1 MiB of f32 per data tile; x2 (in+out) x2 (double
                           # buffer) stays far below the 16 MiB scoped-VMEM
                           # default on v5e (and the 64 MiB physical on v7x).


def _choose_layout(n, d):
    """Return (transposed, bn): kernel-facing layout + batch-axis tile size."""
    transposed = d < 128            # small feature dim -> put N on the lane axis
    mult = 128 if transposed else 8
    target = max(1, _TILE_ELEMS // max(d, 1))
    bn = max(mult, (target // mult) * mult)
    if bn >= n:
        bn = n                      # single block; a full-extent dim is always legal
    return transposed, bn


# ----------------------------- kernels ------------------------------------- #

def _col_sum_kernel(z_ref, out_ref, acc_ref, *, axis, n_valid, bn):
    """Per-feature sum of z over the (tiled) batch axis — streaming accumulator."""
    i = pl.program_id(0)

    @pl.when(i == 0)
    def _():
        acc_ref[...] = jnp.zeros_like(acc_ref)

    z = z_ref[...].astype(jnp.float32)
    if n_valid % bn != 0:   # mask the out-of-bounds tail of the last partial block
        idx = lax.broadcasted_iota(jnp.int32, z.shape, axis) + i * bn
        z = jnp.where(idx < n_valid, z, 0.0)
    acc_ref[...] += jnp.sum(z, axis=axis, keepdims=True)

    @pl.when(i == pl.num_programs(0) - 1)
    def _():
        out_ref[...] = acc_ref[...]


def _centered_sumsq_kernel(z_ref, mean_ref, out_ref, acc_ref, *, axis, n_valid, bn):
    """Per-feature sum of (z - mean)^2 over the (tiled) batch axis."""
    i = pl.program_id(0)

    @pl.when(i == 0)
    def _():
        acc_ref[...] = jnp.zeros_like(acc_ref)

    d = z_ref[...].astype(jnp.float32) - mean_ref[...]
    if n_valid % bn != 0:
        idx = lax.broadcasted_iota(jnp.int32, d.shape, axis) + i * bn
        d = jnp.where(idx < n_valid, d, 0.0)
    acc_ref[...] += jnp.sum(d * d, axis=axis, keepdims=True)

    @pl.when(i == pl.num_programs(0) - 1)
    def _():
        out_ref[...] = acc_ref[...]


def _affine_kernel(z_ref, es_ref, t_ref, out_ref):
    """out = z * exp(s) + t, with exp(s) precomputed outside the kernel."""
    z = z_ref[...].astype(jnp.float32)
    out_ref[...] = (z * es_ref[...] + t_ref[...]).astype(out_ref.dtype)


# ----------------------------- wrappers ------------------------------------ #

def _specs(shape, transposed, bn):
    """Grid + BlockSpecs for the batch-tiled data array and per-feature vectors."""
    if transposed:
        d, n = shape
        data_block, data_idx = (d, bn), (lambda i: (0, i))
        vec_shape, axis = (d, 1), 1
    else:
        n, d = shape
        data_block, data_idx = (bn, d), (lambda i: (i, 0))
        vec_shape, axis = (1, d), 0
    grid = (pl.cdiv(n, bn),)
    data_spec = pl.BlockSpec(data_block, data_idx)
    vec_spec = pl.BlockSpec(vec_shape, lambda i: (0, 0))
    return grid, data_spec, vec_spec, vec_shape, axis, n


def _col_sum(z, *, transposed, bn):
    grid, data_spec, vec_spec, vec_shape, axis, n = _specs(z.shape, transposed, bn)
    kernel = functools.partial(_col_sum_kernel, axis=axis, n_valid=n, bn=bn)
    return pl.pallas_call(
        kernel,
        out_shape=jax.ShapeDtypeStruct(vec_shape, jnp.float32),
        grid=grid,
        in_specs=[data_spec],
        out_specs=vec_spec,
        scratch_shapes=[pltpu.VMEM(vec_shape, jnp.float32)],
        compiler_params=pltpu.CompilerParams(dimension_semantics=("arbitrary",)),
    )(z)


def _centered_sumsq(z, mean, *, transposed, bn):
    grid, data_spec, vec_spec, vec_shape, axis, n = _specs(z.shape, transposed, bn)
    kernel = functools.partial(_centered_sumsq_kernel, axis=axis, n_valid=n, bn=bn)
    return pl.pallas_call(
        kernel,
        out_shape=jax.ShapeDtypeStruct(vec_shape, jnp.float32),
        grid=grid,
        in_specs=[data_spec, vec_spec],
        out_specs=vec_spec,
        scratch_shapes=[pltpu.VMEM(vec_shape, jnp.float32)],
        compiler_params=pltpu.CompilerParams(dimension_semantics=("arbitrary",)),
    )(z, mean)


def _affine_apply(z, es, t, *, transposed, bn):
    grid, data_spec, vec_spec, _, _, _ = _specs(z.shape, transposed, bn)
    return pl.pallas_call(
        _affine_kernel,
        out_shape=jax.ShapeDtypeStruct(z.shape, z.dtype),
        grid=grid,
        in_specs=[data_spec, vec_spec, vec_spec],
        out_specs=data_spec,
        compiler_params=pltpu.CompilerParams(dimension_semantics=("parallel",)),
    )(z, es, t)


# ----------------------------- module -------------------------------------- #

class ActNorm:
    """JAX/Pallas mirror of the PyTorch ActNorm module (forward path)."""

    def __init__(self, dim=2, key=None):
        if key is None:
            key = jax.random.PRNGKey(42)
        kt, ks = jax.random.split(key)
        # Deterministic stand-ins for nn.Parameter(torch.randn((1, dim))).
        self.t = jax.random.normal(kt, (1, dim), dtype=jnp.float32)
        self.s = jax.random.normal(ks, (1, dim), dtype=jnp.float32)
        self.init_done = False
        self.log_det_jacobian = jnp.zeros((1,), dtype=jnp.float32)

    def forward(self, z):
        n, d = z.shape
        transposed, bn = _choose_layout(n, d)
        zk = z.T if transposed else z      # layout plumbing only (lane-dense tiles)

        if not self.init_done:
            # Streaming, tiled statistics: mean sweep + centered sum-of-squares
            # sweep (same numerically-safe two-pass form as the reference).
            # NOTE: matches torch.std semantics — a constant column gives
            # s = -log(0) = inf, and N == 1 divides by zero.
            col_sum = _col_sum(zk, transposed=transposed, bn=bn)
            mean = col_sum / n
            sumsq = _centered_sumsq(zk, mean, transposed=transposed, bn=bn)
            var = sumsq / (n - 1)                  # unbiased, matches torch.std
            s = -jnp.log(jnp.sqrt(var))
            t = -mean * jnp.exp(s)                 # == mean(-z * exp(s), dim=0)
            self.s = s.reshape(1, d)
            self.t = t.reshape(1, d)
            self.init_done = True

        es = jnp.exp(self.s)                       # tiny (1, D); hoisted out of kernel
        if transposed:
            es_k, t_k = es.reshape(d, 1), self.t.reshape(d, 1)
        else:
            es_k, t_k = es, self.t
        out_k = _affine_apply(zk, es_k, t_k, transposed=transposed, bn=bn)
        out = out_k.T if transposed else out_k

        self.log_det_jacobian = jnp.sum(self.s, axis=1)   # shape (1,)
        return out

    def inverse(self, x):
        # TODO(synk): inverse flow not wired to a kernel (only forward required here).
        raise NotImplementedError


# ----------------------------- reference / test ----------------------------- #

def _reference_forward_init(z):
    z = z.astype(jnp.float32)
    std = jnp.std(z, axis=0, keepdims=True, ddof=1)
    s = -jnp.log(std)
    t = jnp.mean(-z * jnp.exp(s), axis=0, keepdims=True)
    out = z * jnp.exp(s) + t
    ld = jnp.sum(s, axis=1)
    return out, s, t, ld


if __name__ == "__main__":
    key = jax.random.PRNGKey(0)
    k1, k2, kp = jax.random.split(key, 3)

    # Case 1: module default (dim=2) — small-D transposed, lane-dense path.
    N1, D1 = 8, 2
    z1 = jax.random.normal(k1, (N1, D1), dtype=jnp.float32)
    m1 = ActNorm(dim=D1, key=kp)
    out1 = jax.block_until_ready(m1.forward(z1))    # init + apply (Pallas kernels)
    out1b = jax.block_until_ready(m1.forward(z1))   # apply-only path
    r_out, r_s, r_t, r_ld = _reference_forward_init(z1)
    assert jnp.allclose(out1, r_out, atol=1e-5, rtol=1e-5)
    assert jnp.allclose(out1b, r_out, atol=1e-5, rtol=1e-5)
    assert jnp.allclose(m1.s, r_s, atol=1e-5, rtol=1e-5)
    assert jnp.allclose(m1.t, r_t, atol=1e-5, rtol=1e-5)
    assert jnp.allclose(m1.log_det_jacobian, r_ld, atol=1e-5, rtol=1e-5)

    # Case 2: wider feature dim — row-tiled path with a partial edge block.
    N2, D2 = 2500, 256
    z2 = jax.random.normal(k2, (N2, D2), dtype=jnp.float32)
    m2 = ActNorm(dim=D2, key=kp)
    out2 = jax.block_until_ready(m2.forward(z2))
    r_out2, r_s2, r_t2, r_ld2 = _reference_forward_init(z2)
    assert jnp.allclose(out2, r_out2, atol=1e-4, rtol=1e-4)
    assert jnp.allclose(m2.s, r_s2, atol=1e-4, rtol=1e-4)
    assert jnp.allclose(m2.t, r_t2, atol=1e-4, rtol=1e-4)
    assert jnp.allclose(m2.log_det_jacobian, r_ld2, atol=1e-3, rtol=1e-3)

    print("KERNEL_OK")
</pallas_src>

<mosaic_0001>
module attributes {stable_mosaic.version = 11 : i64} {
  func.func @_col_sum_kernel(%arg0: i32, %arg1: memref<2x8xf32, #tpu.memory_space<vmem>>, %arg2: memref<2x1xf32, #tpu.memory_space<vmem>>, %arg3: memref<2x1xf32, #tpu.memory_space<vmem>>) attributes {dimension_semantics = [#tpu.dimension_semantics<arbitrary>], iteration_bounds = array<i64: 1>, scalar_prefetch = 0 : i64, scratch_operands = 1 : i64, tpu.core_type = #tpu.core_type<tc>, window_params = [{transform_indices = @transform_0, window_bounds = array<i64: 2, 8>}, {pipeline_mode = #tpu.pipeline_mode<synchronous>, transform_indices = @transform_1, window_bounds = array<i64: 2, 1>}]} {
    %c0_i32 = arith.constant 0 : i32
    %0 = arith.cmpi eq, %arg0, %c0_i32 : i32
    %1 = arith.extui %0 : i1 to i32
    %c0_i32_0 = arith.constant 0 : i32
    %2 = arith.cmpi ne, %1, %c0_i32_0 : i32
    scf.if %2 {
      %cst_8 = arith.constant 0.000000e+00 : f32
      %12 = vector.broadcast %cst_8 : f32 to vector<2x1xf32>
      %c0_9 = arith.constant 0 : index
      %c0_10 = arith.constant 0 : index
      %13 = vector.load %arg3[%c0_9, %c0_10] : memref<2x1xf32, #tpu.memory_space<vmem>>, vector<2x1xf32>
      tpu.vector_store %arg3[%c0_9, %c0_10], %12 {strides = array<i32>} : memref<2x1xf32, #tpu.memory_space<vmem>>, vector<2x1xf32>,
    } else {
    }
    %c0 = arith.constant 0 : index
    %c0_1 = arith.constant 0 : index
    %3 = vector.load %arg1[%c0, %c0_1] : memref<2x8xf32, #tpu.memory_space<vmem>>, vector<2x8xf32>
    %c0_2 = arith.constant 0 : index
    %c0_3 = arith.constant 0 : index
    %4 = vector.load %arg3[%c0_2, %c0_3] : memref<2x1xf32, #tpu.memory_space<vmem>>, vector<2x1xf32>
    %cst = arith.constant dense<0.000000e+00> : vector<2xf32>
    %5 = vector.multi_reduction <add>, %3, %cst [1] : vector<2x8xf32> to vector<2xf32>
    %6 = vector.shape_cast %5 : vector<2xf32> to vector<2x1xf32>
    %7 = arith.addf %4, %6 : vector<2x1xf32>
    %c0_4 = arith.constant 0 : index
    %c0_5 = arith.constant 0 : index
    %8 = vector.load %arg3[%c0_4, %c0_5] : memref<2x1xf32, #tpu.memory_space<vmem>>, vector<2x1xf32>
    tpu.vector_store %arg3[%c0_4, %c0_5], %7 {strides = array<i32>} : memref<2x1xf32, #tpu.memory_space<vmem>>, vector<2x1xf32>,
    %c0_i32_6 = arith.constant 0 : i32
    %9 = arith.cmpi eq, %arg0, %c0_i32_6 : i32
    %10 = arith.extui %9 : i1 to i32
    %c0_i32_7 = arith.constant 0 : i32
    %11 = arith.cmpi ne, %10, %c0_i32_7 : i32
    scf.if %11 {
      %c0_8 = arith.constant 0 : index
      %c0_9 = arith.constant 0 : index
      %12 = vector.load %arg3[%c0_8, %c0_9] : memref<2x1xf32, #tpu.memory_space<vmem>>, vector<2x1xf32>
      %c0_10 = arith.constant 0 : index
      %c0_11 = arith.constant 0 : index
      %13 = vector.load %arg2[%c0_10, %c0_11] : memref<2x1xf32, #tpu.memory_space<vmem>>, vector<2x1xf32>
      tpu.vector_store %arg2[%c0_10, %c0_11], %12 {strides = array<i32>} : memref<2x1xf32, #tpu.memory_space<vmem>>, vector<2x1xf32>,
    } else {
    }
    return
  }
  func.func @transform_0(%arg0: i32) -> (i32, i32) {
    %c0_i32 = arith.constant 0 : i32
    %c0_i32_0 = arith.constant 0 : i32
    return %c0_i32, %arg0 : i32, i32
  }
  func.func @transform_1(%arg0: i32) -> (i32, i32) {
    %c0_i32 = arith.constant 0 : i32
    %c0_i32_0 = arith.constant 0 : i32
    %c0_i32_1 = arith.constant 0 : i32
    return %c0_i32, %c0_i32_0 : i32, i32
  }
}

</mosaic_0001>

<llo_original>
// kernel: tpu_custom_call.1
$region0: #{tpu_custom_call.1}
  #allocation0 [shape = 'u32[]', space=smem, size = 0x4, offset = 0x4, fixed_abs, tag = 'smem constant byte address 0x4 - core index']
  #allocation1 [shape = 'u32[144,128]{1,0:T(1,128)}', space=vmem, size = 0x12000, scoped, tag = 'internal scratch']
  #allocation2 [shape = 'f32[2,1]{1,0:T(2,128)}', space=vmem, size = 0x400, scoped, tag = 'scratch operand']
  %s0 = inlined_call_operand.hbm [shape: f32[2,8], index: 0, kind: input, shape index: {}]
  %s1 = inlined_call_operand.vmem [shape: f32[2,1], index: 1, kind: output, shape index: {}]
  %s2 = sld [smem:[#allocation0]]
  $region26: #{tpu_custom_call.1} parent=0
    _
  %s4 = ssub.s32 1, %s2
  %s5 = scalar_select 0, %s4, %s2
  $region1: #{tpu_custom_call.1} parent=0
    #allocation3 [shape = 'u8[1024]{0}', space=vmem, size = 0x400, scoped, tag = 'input window, operand 0, single buffered']
    #allocation4 [shape = 's32[1]{0}', space=sflag, size = 0x4, scoped, tag = 'scoped memory for tpu_custom_call.1']
    %6 = vsyncpa [#allocation4], 0
    // Predicated region
    $region2: #{tpu_custom_call.1} parent=1 // pred_check
      _
    $region3: #{tpu_custom_call.1} parent=1 // pred_check_branch
      %8 = sbr.rel (0) target = $region5
    $region4: #{tpu_custom_call.1} parent=1 // pred_region
      %s10 = ssub.s32 32, 32
      %11 = vsyncadd [#allocation4], %s10
      %s13 = sshll.u32 [#allocation3], 4
      %s14 = int_to_ptr.vmem [resolvable:$true] %s13
      %16 = dma.hbm_to_vmem [thread:$0]  %s0, 32, %s14, [#allocation4]
    $region5: #{tpu_custom_call.1} parent=1 // pred_fallthru
      _
    // Predicated region
    $region6: #{tpu_custom_call.1} parent=1 // pred_check
      _
    $region7: #{tpu_custom_call.1} parent=1 // pred_check_branch
      %18 = sbr.rel (0) target = $region9
    $region8: #{tpu_custom_call.1} parent=1 // pred_region
      %19 = dma.done [#allocation4], 32
    $region9: #{tpu_custom_call.1} parent=1 // pred_fallthru
      _
    %p20 = scmp.eq.s32.totalorder 0, 0
    // Predicated region
    $region10: #{tpu_custom_call.1} parent=1 // pred_check
      %p21 = pneg %p20
    $region11: #{tpu_custom_call.1} parent=1 // pred_check_branch
      %23 = sbr.rel (%p21) target = $region13
    $region12: #{tpu_custom_call.1} parent=1 // pred_region
      %vm24 = vcmask 1024
      %25 = vst.msk [vmem:[#allocation2] sm:$0x3] %vm24, 0.0
    $region13: #{tpu_custom_call.1} parent=1 // pred_fallthru
      _
    %v26 = vld [vmem:[#allocation3] sm:$0x3]
    %v27 = vld [vmem:[#allocation2] sm:$0x3]
    %vm28 = vcmask 58368
    %v29 = vsel %vm28, %v26, 0.0
    %30 = vadd.xlane.f32.xlu0 %v29
    %v31 = vpop.xlane.xlu0 %30
    %v32 = vadd.f32 %v27, %v31
    %vm33 = vcmask 1024
    %34 = vst.msk [vmem:[#allocation2] sm:$0x3] %vm33, %v32
    // Predicated region
    $region14: #{tpu_custom_call.1} parent=1 // pred_check
      %p35 = pneg %p20
    $region15: #{tpu_custom_call.1} parent=1 // pred_check_branch
      %37 = sbr.rel (%p35) target = $region17
    $region16: #{tpu_custom_call.1} parent=1 // pred_region
      %v38 = vld [vmem:[#allocation2] sm:$0x3]
      %39 = vst.msk [vmem:[%s1] sm:$0x3] %vm33, %v38
    $region17: #{tpu_custom_call.1} parent=1 // pred_fallthru
      _
    // Predicated region
    $region18: #{tpu_custom_call.1} parent=1 // pred_check
      _
    $region19: #{tpu_custom_call.1} parent=1 // pred_check_branch
      %41 = sbr.rel (0) target = $region21
    $region20: #{tpu_custom_call.1} parent=1 // pred_region
      _
    $region21: #{tpu_custom_call.1} parent=1 // pred_fallthru
      _
    // Predicated region
    $region22: #{tpu_custom_call.1} parent=1 // pred_check
      _
    $region23: #{tpu_custom_call.1} parent=1 // pred_check_branch
      %43 = sbr.rel (0) target = $region25
    $region24: #{tpu_custom_call.1} parent=1 // pred_region
      _
    $region25: #{tpu_custom_call.1} parent=1 // pred_fallthru
      _
    %44 = vsyncpa [#allocation4], 1

</llo_original>
